<compile_context>
chip_gen: v7x
topology: tpu7x:2x2x1
jax: 0.10.0
libtpu: 0.0.40
codegen_flags: <defaults>
</compile_context>

<pallas_src>
import jax
import jax.numpy as jnp
from jax.experimental import pallas as pl
from jax.experimental.pallas import tpu as pltpu

IN_FEAT = 1 + 496          # 497 raw features (flattened coords + labels)
PAD_FEAT = 512             # padded, MXU/lane-aligned K of the first matmul
H1 = 512
H2 = 256


def _round_up(x, m):
    return ((x + m - 1) // m) * m


def discriminator_kernel(x_ref, w1_ref, b1_ref, w2_ref, b2_ref, w3_ref, b3_ref,
                         o_ref):
    # x_ref: (TILE_B, 512) bf16 block of the padded [coords | labels | 0] input.
    x = x_ref[...]

    # Layer 1: (TILE_B, 512) @ (512, 512) — bf16 MXU inputs, f32 accumulation.
    h1 = jnp.dot(x, w1_ref[...], preferred_element_type=jnp.float32)
    h1 = h1 + b1_ref[...]
    h1 = jnp.maximum(h1, 0.2 * h1)                       # LeakyReLU(0.2), f32 VPU

    # Layer 2: (TILE_B, 512) @ (512, 256).
    h2 = jnp.dot(h1.astype(jnp.bfloat16), w2_ref[...],
                 preferred_element_type=jnp.float32)
    h2 = h2 + b2_ref[...]
    h2 = jnp.maximum(h2, 0.2 * h2)                       # (TILE_B, 256), f32

    # Layer 3 (256 -> 1): N=1 would waste the MXU; use VPU multiply + cross-lane
    # reduce instead.  w3 is passed as a (1, 256) row.
    logit = jnp.sum(h2 * w3_ref[...], axis=-1)           # (TILE_B,)
    logit = logit[None, :] + b3_ref[...]                 # (1, TILE_B), lane-dense

    # Sigmoid (exact).
    o_ref[...] = 1.0 / (1.0 + jnp.exp(-logit))


def discriminator_forward(coords, labels, kernel_params, *, tile_b=512):
    """coords: (B, ...) flattened to (B, 496); labels: (B, 1)."""
    B = coords.shape[0]
    coords = coords.reshape(B, -1).astype(jnp.float32)
    labels = labels.reshape(B, -1).astype(jnp.float32)
    assert coords.shape[1] + labels.shape[1] == IN_FEAT

    # Concat + zero-pad the feature dim 497 -> 512 once (W1 has matching zero
    # rows, so the math is unchanged).
    x = jnp.concatenate([coords, labels], axis=-1)
    x = jnp.pad(x, ((0, 0), (0, PAD_FEAT - IN_FEAT)))

    # Batch tiling: activations stream per tile, weights stay VMEM-resident.
    tile_b = min(tile_b, _round_up(B, 8))
    b_pad = _round_up(B, tile_b)
    if b_pad != B:
        x = jnp.pad(x, ((0, b_pad - B), (0, 0)))
    num_tiles = b_pad // tile_b
    x = x.astype(jnp.bfloat16)

    w1, b1, w2, b2, w3, b3 = kernel_params

    cost = pl.CostEstimate(
        flops=2 * b_pad * (PAD_FEAT * H1 + H1 * H2 + H2),
        transcendentals=b_pad,
        bytes_accessed=(b_pad * PAD_FEAT * 2 + b_pad * 4
                        + (PAD_FEAT * H1 + H1 * H2) * 2
                        + (H1 + 2 * H2 + 1) * 4),
    )

    out = pl.pallas_call(
        discriminator_kernel,
        out_shape=jax.ShapeDtypeStruct((num_tiles, tile_b), jnp.float32),
        grid=(num_tiles,),
        in_specs=[
            pl.BlockSpec((tile_b, PAD_FEAT), lambda i: (i, 0)),   # activations
            pl.BlockSpec((PAD_FEAT, H1), lambda i: (0, 0)),       # W1 (resident)
            pl.BlockSpec((1, H1), lambda i: (0, 0)),              # b1
            pl.BlockSpec((H1, H2), lambda i: (0, 0)),             # W2 (resident)
            pl.BlockSpec((1, H2), lambda i: (0, 0)),              # b2
            pl.BlockSpec((1, H2), lambda i: (0, 0)),              # w3 (row)
            pl.BlockSpec((1, 1), lambda i: (0, 0)),               # b3
        ],
        # Lane-dense output: one (1, TILE_B) row per grid step (batch -> lanes).
        out_specs=pl.BlockSpec((1, tile_b), lambda i: (i, 0)),
        compiler_params=pltpu.CompilerParams(
            dimension_semantics=("parallel",)),
        cost_estimate=cost,
    )(x, w1, b1, w2, b2, w3, b3)

    return out.reshape(-1)[:B].reshape(B, 1)


def init_params(key):
    """PyTorch nn.Linear-style U(-1/sqrt(fan_in), 1/sqrt(fan_in)) init, f32.
    Weights are stored pre-transposed as (in_features, out_features)."""
    ks = jax.random.split(key, 6)

    def lin(kw, kb, fin, fout):
        bound = 1.0 / (fin ** 0.5)
        w = jax.random.uniform(kw, (fin, fout), jnp.float32, -bound, bound)
        b = jax.random.uniform(kb, (fout,), jnp.float32, -bound, bound)
        return w, b

    w1, b1 = lin(ks[0], ks[1], IN_FEAT, H1)
    w2, b2 = lin(ks[2], ks[3], H1, H2)
    w3, b3 = lin(ks[4], ks[5], H2, 1)
    return (w1, b1, w2, b2, w3, b3)


def prepare_params(params):
    """Pad / cast params into the kernel layout:
       W1: (512, 512) bf16 with zero rows 497..511, W2: (512, 256) bf16,
       w3: (1, 256) f32 row, biases as f32 rows, b3 as (1, 1) f32."""
    w1, b1, w2, b2, w3, b3 = params
    w1p = jnp.pad(w1, ((0, PAD_FEAT - IN_FEAT), (0, 0))).astype(jnp.bfloat16)
    w2p = w2.astype(jnp.bfloat16)
    w3p = w3.reshape(1, H2).astype(jnp.float32)
    return (w1p,
            b1.reshape(1, H1).astype(jnp.float32),
            w2p,
            b2.reshape(1, H2).astype(jnp.float32),
            w3p,
            b3.reshape(1, 1).astype(jnp.float32))


if __name__ == "__main__":
    key = jax.random.PRNGKey(0)
    k_coords, k_labels, k_params = jax.random.split(key, 3)

    B = 4
    coords = jax.random.normal(k_coords, (B, 496), jnp.float32)   # flattens to 496
    labels = jax.random.normal(k_labels, (B, 1), jnp.float32)     # 1 label feature

    params = init_params(k_params)
    kparams = prepare_params(params)

    validity = discriminator_forward(coords, labels, kparams)
    validity = jax.block_until_ready(validity)
    assert validity.shape == (B, 1)

    # Pure-JAX reference (same bf16-input / f32-accumulate math, no Pallas).
    w1, b1, w2, b2, w3, b3 = params
    c = jnp.concatenate([coords, labels], axis=-1)
    h1 = jnp.dot(c.astype(jnp.bfloat16), w1.astype(jnp.bfloat16),
                 preferred_element_type=jnp.float32) + b1
    h1 = jnp.maximum(h1, 0.2 * h1)
    h2 = jnp.dot(h1.astype(jnp.bfloat16), w2.astype(jnp.bfloat16),
                 preferred_element_type=jnp.float32) + b2
    h2 = jnp.maximum(h2, 0.2 * h2)
    ref = 1.0 / (1.0 + jnp.exp(-(h2 @ w3 + b3)))

    assert jnp.allclose(validity, ref, atol=2e-3, rtol=2e-3), (
        float(jnp.max(jnp.abs(validity - ref))))
    print("KERNEL_OK")
</pallas_src>

<mosaic_0001>
module attributes {stable_mosaic.version = 11 : i64} {
  func.func @discriminator_kernel(%arg0: i32, %arg1: memref<8x512xbf16, #tpu.memory_space<vmem>>, %arg2: memref<512x512xbf16, #tpu.memory_space<vmem>>, %arg3: memref<1x512xf32, #tpu.memory_space<vmem>>, %arg4: memref<512x256xbf16, #tpu.memory_space<vmem>>, %arg5: memref<1x256xf32, #tpu.memory_space<vmem>>, %arg6: memref<1x256xf32, #tpu.memory_space<vmem>>, %arg7: memref<1x1xf32, #tpu.memory_space<vmem>>, %arg8: memref<1x8xf32, #tpu.memory_space<vmem>>) attributes {dimension_semantics = [#tpu.dimension_semantics<parallel>], iteration_bounds = array<i64: 1>, scalar_prefetch = 0 : i64, scratch_operands = 0 : i64, tpu.core_type = #tpu.core_type<tc>, window_params = [{transform_indices = @transform_0, window_bounds = array<i64: 8, 512>}, {pipeline_mode = #tpu.pipeline_mode<synchronous>, transform_indices = @transform_1, window_bounds = array<i64: 512, 512>}, {pipeline_mode = #tpu.pipeline_mode<synchronous>, transform_indices = @transform_2, window_bounds = array<i64: 1, 512>}, {pipeline_mode = #tpu.pipeline_mode<synchronous>, transform_indices = @transform_3, window_bounds = array<i64: 512, 256>}, {pipeline_mode = #tpu.pipeline_mode<synchronous>, transform_indices = @transform_4, window_bounds = array<i64: 1, 256>}, {pipeline_mode = #tpu.pipeline_mode<synchronous>, transform_indices = @transform_5, window_bounds = array<i64: 1, 256>}, {pipeline_mode = #tpu.pipeline_mode<synchronous>, transform_indices = @transform_6, window_bounds = array<i64: 1, 1>}, {transform_indices = @transform_7, window_bounds = array<i64: 1, 8>}]} {
    %c0 = arith.constant 0 : index
    %c0_0 = arith.constant 0 : index
    %0 = vector.load %arg1[%c0, %c0_0] : memref<8x512xbf16, #tpu.memory_space<vmem>>, vector<8x512xbf16>
    %c0_1 = arith.constant 0 : index
    %c0_2 = arith.constant 0 : index
    %1 = vector.load %arg2[%c0_1, %c0_2] : memref<512x512xbf16, #tpu.memory_space<vmem>>, vector<512x512xbf16>
    %cst = arith.constant dense<0.000000e+00> : vector<8x512xf32>
    %2 = tpu.matmul %0, %1, %cst {dimension_numbers = #tpu.dot_dimension_numbers<[1], [0], [0], [1], [0, 0, 1, 1], [], []>} : vector<8x512xbf16>, vector<512x512xbf16>, vector<8x512xf32> -> vector<8x512xf32>
    %c0_3 = arith.constant 0 : index
    %c0_4 = arith.constant 0 : index
    %3 = vector.load %arg3[%c0_3, %c0_4] : memref<1x512xf32, #tpu.memory_space<vmem>>, vector<1x512xf32>
    %4 = vector.broadcast %3 : vector<1x512xf32> to vector<8x512xf32>
    %5 = arith.addf %2, %4 : vector<8x512xf32>
    %cst_5 = arith.constant 2.000000e-01 : f32
    %6 = vector.broadcast %cst_5 : f32 to vector<8x512xf32>
    %7 = arith.mulf %6, %5 : vector<8x512xf32>
    %8 = arith.maximumf %5, %7 : vector<8x512xf32>
    %9 = arith.truncf %8 : vector<8x512xf32> to vector<8x512xbf16>
    %c0_6 = arith.constant 0 : index
    %c0_7 = arith.constant 0 : index
    %10 = vector.load %arg4[%c0_6, %c0_7] : memref<512x256xbf16, #tpu.memory_space<vmem>>, vector<512x256xbf16>
    %cst_8 = arith.constant dense<0.000000e+00> : vector<8x256xf32>
    %11 = tpu.matmul %9, %10, %cst_8 {dimension_numbers = #tpu.dot_dimension_numbers<[1], [0], [0], [1], [0, 0, 1, 1], [], []>} : vector<8x512xbf16>, vector<512x256xbf16>, vector<8x256xf32> -> vector<8x256xf32>
    %c0_9 = arith.constant 0 : index
    %c0_10 = arith.constant 0 : index
    %12 = vector.load %arg5[%c0_9, %c0_10] : memref<1x256xf32, #tpu.memory_space<vmem>>, vector<1x256xf32>
    %13 = vector.broadcast %12 : vector<1x256xf32> to vector<8x256xf32>
    %14 = arith.addf %11, %13 : vector<8x256xf32>
    %cst_11 = arith.constant 2.000000e-01 : f32
    %15 = vector.broadcast %cst_11 : f32 to vector<8x256xf32>
    %16 = arith.mulf %15, %14 : vector<8x256xf32>
    %17 = arith.maximumf %14, %16 : vector<8x256xf32>
    %c0_12 = arith.constant 0 : index
    %c0_13 = arith.constant 0 : index
    %18 = vector.load %arg6[%c0_12, %c0_13] : memref<1x256xf32, #tpu.memory_space<vmem>>, vector<1x256xf32>
    %19 = vector.broadcast %18 : vector<1x256xf32> to vector<8x256xf32>
    %20 = arith.mulf %17, %19 : vector<8x256xf32>
    %cst_14 = arith.constant dense<0.000000e+00> : vector<8xf32>
    %21 = vector.multi_reduction <add>, %20, %cst_14 [1] : vector<8x256xf32> to vector<8xf32>
    %22 = vector.shape_cast %21 : vector<8xf32> to vector<1x8xf32>
    %c0_15 = arith.constant 0 : index
    %c0_16 = arith.constant 0 : index
    %23 = vector.load %arg7[%c0_15, %c0_16] : memref<1x1xf32, #tpu.memory_space<vmem>>, vector<1x1xf32>
    %24 = vector.broadcast %23 : vector<1x1xf32> to vector<1x8xf32>
    %25 = arith.addf %22, %24 : vector<1x8xf32>
    %cst_17 = arith.constant 0.000000e+00 : f32
    %26 = vector.broadcast %cst_17 : f32 to vector<1x8xf32>
    %27 = arith.subf %26, %25 : vector<1x8xf32>
    %28 = math.exp %27 : vector<1x8xf32>
    %cst_18 = arith.constant 1.000000e+00 : f32
    %29 = vector.broadcast %cst_18 : f32 to vector<1x8xf32>
    %30 = arith.addf %29, %28 : vector<1x8xf32>
    %cst_19 = arith.constant 1.000000e+00 : f32
    %31 = vector.broadcast %cst_19 : f32 to vector<1x8xf32>
    %32 = arith.divf %31, %30 : vector<1x8xf32>
    %c0_20 = arith.constant 0 : index
    %c0_21 = arith.constant 0 : index
    %33 = vector.load %arg8[%c0_20, %c0_21] : memref<1x8xf32, #tpu.memory_space<vmem>>, vector<1x8xf32>
    tpu.vector_store %arg8[%c0_20, %c0_21], %32 {strides = array<i32>} : memref<1x8xf32, #tpu.memory_space<vmem>>, vector<1x8xf32>,
    return
  }
  func.func @transform_0(%arg0: i32) -> (i32, i32) {
    %c0_i32 = arith.constant 0 : i32
    %c0_i32_0 = arith.constant 0 : i32
    return %arg0, %c0_i32 : i32, i32
  }
  func.func @transform_1(%arg0: i32) -> (i32, i32) {
    %c0_i32 = arith.constant 0 : i32
    %c0_i32_0 = arith.constant 0 : i32
    %c0_i32_1 = arith.constant 0 : i32
    return %c0_i32, %c0_i32_0 : i32, i32
  }
  func.func @transform_2(%arg0: i32) -> (i32, i32) {
    %c0_i32 = arith.constant 0 : i32
    %c0_i32_0 = arith.constant 0 : i32
    %c0_i32_1 = arith.constant 0 : i32
    return %c0_i32, %c0_i32_0 : i32, i32
  }
  func.func @transform_3(%arg0: i32) -> (i32, i32) {
    %c0_i32 = arith.constant 0 : i32
    %c0_i32_0 = arith.constant 0 : i32
    %c0_i32_1 = arith.constant 0 : i32
    return %c0_i32, %c0_i32_0 : i32, i32
  }
  func.func @transform_4(%arg0: i32) -> (i32, i32) {
    %c0_i32 = arith.constant 0 : i32
    %c0_i32_0 = arith.constant 0 : i32
    %c0_i32_1 = arith.constant 0 : i32
    return %c0_i32, %c0_i32_0 : i32, i32
  }
  func.func @transform_5(%arg0: i32) -> (i32, i32) {
    %c0_i32 = arith.constant 0 : i32
    %c0_i32_0 = arith.constant 0 : i32
    %c0_i32_1 = arith.constant 0 : i32
    return %c0_i32, %c0_i32_0 : i32, i32
  }
  func.func @transform_6(%arg0: i32) -> (i32, i32) {
    %c0_i32 = arith.constant 0 : i32
    %c0_i32_0 = arith.constant 0 : i32
    %c0_i32_1 = arith.constant 0 : i32
    return %c0_i32, %c0_i32_0 : i32, i32
  }
  func.func @transform_7(%arg0: i32) -> (i32, i32) {
    %c0_i32 = arith.constant 0 : i32
    %c0_i32_0 = arith.constant 0 : i32
    return %arg0, %c0_i32 : i32, i32
  }
}

</mosaic_0001>

<llo_original>
// kernel: tpu_custom_call.1
$region0: #{tpu_custom_call.1}
  #allocation0 [shape = 'u32[]', space=smem, size = 0x4, offset = 0x4, fixed_abs, tag = 'smem constant byte address 0x4 - core index']
  #allocation1 [shape = 'u32[144,128]{1,0:T(1,128)}', space=vmem, size = 0x12000, scoped, tag = 'internal scratch']
  #allocation2 [shape = 'f32[1,1]{1,0:T(1,128)S(1)}', space=vmem, size = 0x200, scoped, tag = 'scoped memory for tpu_custom_call.1']
  %s0 = inlined_call_operand.hbm [shape: bf16[8,512], index: 0, kind: input, shape index: {}]
  %s1 = inlined_call_operand.hbm [shape: bf16[512,512], index: 1, kind: input, shape index: {}]
  %s2 = inlined_call_operand.vmem [shape: f32[1,512], index: 2, kind: input, shape index: {}]
  %s3 = inlined_call_operand.hbm [shape: bf16[512,256], index: 3, kind: input, shape index: {}]
  %s4 = inlined_call_operand.vmem [shape: f32[1,256], index: 4, kind: input, shape index: {}]
  %s5 = inlined_call_operand.vmem [shape: f32[1,256], index: 5, kind: input, shape index: {}]
  %s6 = inlined_call_operand.<no memory space> [shape: f32[1,1], index: 6, kind: input, shape index: {}]
  %s7 = inlined_call_operand.hbm [shape: f32[1,8], index: 7, kind: output, shape index: {}]
  %s8 = sld [smem:[#allocation0]]
  $region50: #{tpu_custom_call.1} parent=0
    _
  %s10 = ssub.s32 1, %s8
  %s11 = scalar_select 0, %s10, %s8
  %v12 = vstv %s6
  %13 = vst [vmem:[#allocation2] sm:$0x1] %v12
  $region1: #{tpu_custom_call.1} parent=0
    #allocation3 [shape = 'u8[8192]{0}', space=vmem, size = 0x2000, scoped, tag = 'input window, operand 0, single buffered']
    #allocation4 [shape = 's32[1]{0}', space=sflag, size = 0x4, scoped, tag = 'scoped memory for tpu_custom_call.1']
    #allocation5 [shape = 's32[1]{0}', space=sflag, size = 0x4, scoped, tag = 'scoped memory for tpu_custom_call.1']
    #allocation6 [shape = 'u8[524288]{0}', space=vmem, size = 0x80000, scoped, tag = 'input window, operand 1, single buffered']
    #allocation7 [shape = 's32[1]{0}', space=sflag, size = 0x4, scoped, tag = 'scoped memory for tpu_custom_call.1']
    #allocation8 [shape = 'u8[262144]{0}', space=vmem, size = 0x40000, scoped, tag = 'input window, operand 3, single buffered']
    #allocation9 [shape = 'u8[512]{0}', space=vmem, size = 0x400, scoped, tag = 'output window, operand 0, single buffered']
    %14 = vsyncpa [#allocation4], 0
    %15 = vsyncpa [#allocation7], 0
    %16 = vsyncpa [#allocation5], 0
    // Predicated region
    $region2: #{tpu_custom_call.1} parent=1 // pred_check
      _
    $region3: #{tpu_custom_call.1} parent=1 // pred_check_branch
      %18 = sbr.rel (0) target = $region5
    $region4: #{tpu_custom_call.1} parent=1 // pred_region
      %s20 = ssub.s32 256, 256
      %21 = vsyncadd [#allocation4], %s20
      %s23 = sshll.u32 [#allocation3], 4
      %s24 = int_to_ptr.vmem [resolvable:$true] %s23
      %26 = dma.hbm_to_vmem [thread:$0]  %s0, 256, %s24, [#allocation4]
    $region5: #{tpu_custom_call.1} parent=1 // pred_fallthru
      _
    // Predicated region
    $region6: #{tpu_custom_call.1} parent=1 // pred_check
      _
    $region7: #{tpu_custom_call.1} parent=1 // pred_check_branch
      %28 = sbr.rel (0) target = $region9
    $region8: #{tpu_custom_call.1} parent=1 // pred_region
      %s30 = ssub.s32 16384, 16384
      %31 = vsyncadd [#allocation7], %s30
      %s32 = sshll.u32 [#allocation6], 4
      %s33 = int_to_ptr.vmem [resolvable:$true] %s32
      %38 = dma.hbm_to_vmem [thread:$0]  %s1, 16384, %s33, [#allocation7], 256, 256, 16
    $region9: #{tpu_custom_call.1} parent=1 // pred_fallthru
      _
    // Predicated region
    $region10: #{tpu_custom_call.1} parent=1 // pred_check
      _
    $region11: #{tpu_custom_call.1} parent=1 // pred_check_branch
      %40 = sbr.rel (0) target = $region13
    $region12: #{tpu_custom_call.1} parent=1 // pred_region
      _
    $region13: #{tpu_custom_call.1} parent=1 // pred_fallthru
      _
    // Predicated region
    $region14: #{tpu_custom_call.1} parent=1 // pred_check
      _
    $region15: #{tpu_custom_call.1} parent=1 // pred_check_branch
      %42 = sbr.rel (0) target = $region17
    $region16: #{tpu_custom_call.1} parent=1 // pred_region
      %s44 = ssub.s32 8192, 8192
      %45 = vsyncadd [#allocation7], %s44
      %s46 = sshll.u32 [#allocation8], 4
      %s47 = int_to_ptr.vmem [resolvable:$true] %s46
      %52 = dma.hbm_to_vmem [thread:$0]  %s3, 8192, %s47, [#allocation7], 128, 128, 8
    $region17: #{tpu_custom_call.1} parent=1 // pred_fallthru
      _
    // Predicated region
    $region18: #{tpu_custom_call.1} parent=1 // pred_check
      _
    $region19: #{tpu_custom_call.1} parent=1 // pred_check_branch
      %54 = sbr.rel (0) target = $region21
    $region20: #{tpu_custom_call.1} parent=1 // pred_region
      _
    $region21: #{tpu_custom_call.1} parent=1 // pred_fallthru
      _
    // Predicated region
    $region22: #{tpu_custom_call.1} parent=1 // pred_check
      _
    $region23: #{tpu_custom_call.1} parent=1 // pred_check_branch
      %56 = sbr.rel (0) target = $region25
    $region24: #{tpu_custom_call.1} parent=1 // pred_region
      _
    $region25: #{tpu_custom_call.1} parent=1 // pred_fallthru
      _
    // Predicated region
    $region26: #{tpu_custom_call.1} parent=1 // pred_check
      _
    $region27: #{tpu_custom_call.1} parent=1 // pred_check_branch
      %58 = sbr.rel (0) target = $region29
    $region28: #{tpu_custom_call.1} parent=1 // pred_region
      _
    $region29: #{tpu_custom_call.1} parent=1 // pred_fallthru
      _
    // Predicated region
    $region30: #{tpu_custom_call.1} parent=1 // pred_check
      _
    $region31: #{tpu_custom_call.1} parent=1 // pred_check_branch
      %60 = sbr.rel (0) target = $region33
    $region32: #{tpu_custom_call.1} parent=1 // pred_region
      %61 = dma.done [#allocation4], 256
    $region33: #{tpu_custom_call.1} parent=1 // pred_fallthru
      _
    // Predicated region
    $region34: #{tpu_custom_call.1} parent=1 // pred_check
      _
    $region35: #{tpu_custom_call.1} parent=1 // pred_check_branch
      %63 = sbr.rel (0) target = $region37
    $region36: #{tpu_custom_call.1} parent=1 // pred_region
      %64 = dma.done [#allocation7], 16384
    $region37: #{tpu_custom_call.1} parent=1 // pred_fallthru
      _
    // Predicated region
    $region38: #{tpu_custom_call.1} parent=1 // pred_check
      _
    $region39: #{tpu_custom_call.1} parent=1 // pred_check_branch
      %66 = sbr.rel (0) target = $region41
    $region40: #{tpu_custom_call.1} parent=1 // pred_region
      %67 = dma.done [#allocation7], 8192
    $region41: #{tpu_custom_call.1} parent=1 // pred_fallthru
      _
    %v68 = vld [vmem:[#allocation3] sm:$0xff]
    %v69 = vld [vmem:[#allocation3 + $0x8] sm:$0xff]
    %v70 = vld [vmem:[#allocation6] sm:$0xff]
    %v71 = vld [vmem:[#allocation6 + $0x8] sm:$0xff]
    %v72 = vld [vmem:[#allocation6 + $0x10] sm:$0xff]
    %v73 = vld [vmem:[#allocation6 + $0x18] sm:$0xff]
    %v74 = vld [vmem:[#allocation6 + $0x20] sm:$0xff]
    %v75 = vld [vmem:[#allocation6 + $0x28] sm:$0xff]
    %v76 = vld [vmem:[#allocation6 + $0x30] sm:$0xff]
    %v77 = vld [vmem:[#allocation6 + $0x38] sm:$0xff]
    %v78 = vld [vmem:[#allocation6 + $0x40] sm:$0xff]
    %v79 = vld [vmem:[#allocation6 + $0x48] sm:$0xff]
    %v80 = vld [vmem:[#allocation6 + $0x50] sm:$0xff]
    %v81 = vld [vmem:[#allocation6 + $0x58] sm:$0xff]
    %v82 = vld [vmem:[#allocation6 + $0x60] sm:$0xff]
    %v83 = vld [vmem:[#allocation6 + $0x68] sm:$0xff]
    %v84 = vld [vmem:[#allocation6 + $0x70] sm:$0xff]
    %v85 = vld [vmem:[#allocation6 + $0x78] sm:$0xff]
    %v86 = vld [vmem:[#allocation6 + $0x80] sm:$0xff]
    %v87 = vld [vmem:[#allocation6 + $0x88] sm:$0xff]
    %v88 = vld [vmem:[#allocation6 + $0x90] sm:$0xff]
    %v89 = vld [vmem:[#allocation6 + $0x98] sm:$0xff]
    %v90 = vld [vmem:[#allocation6 + $0xa0] sm:$0xff]
    %v91 = vld [vmem:[#allocation6 + $0xa8] sm:$0xff]
    %v92 = vld [vmem:[#allocation6 + $0xb0] sm:$0xff]
    %v93 = vld [vmem:[#allocation6 + $0xb8] sm:$0xff]
    %v94 = vld [vmem:[#allocation6 + $0xc0] sm:$0xff]
    %v95 = vld [vmem:[#allocation6 + $0xc8] sm:$0xff]
    %v96 = vld [vmem:[#allocation6 + $0xd0] sm:$0xff]
    %v97 = vld [vmem:[#allocation6 + $0xd8] sm:$0xff]
    %v98 = vld [vmem:[#allocation6 + $0xe0] sm:$0xff]
    %v99 = vld [vmem:[#allocation6 + $0xe8] sm:$0xff]
    %v100 = vld [vmem:[#allocation6 + $0xf0] sm:$0xff]
    %v101 = vld [vmem:[#allocation6 + $0xf8] sm:$0xff]
    %v102 = vld [vmem:[#allocation6 + $0x100] sm:$0xff]
    %v103 = vld [vmem:[#allocation6 + $0x108] sm:$0xff]
    %v104 = vld [vmem:[#allocation6 + $0x110] sm:$0xff]
    %v105 = vld [vmem:[#allocation6 + $0x118] sm:$0xff]
    %v106 = vld [vmem:[#allocation6 + $0x120] sm:$0xff]
    %v107 = vld [vmem:[#allocation6 + $0x128] sm:$0xff]
    %v108 = vld [vmem:[#allocation6 + $0x130] sm:$0xff]
    %v109 = vld [vmem:[#allocation6 + $0x138] sm:$0xff]
    %v110 = vld [vmem:[#allocation6 + $0x140] sm:$0xff]
    %v111 = vld [vmem:[#allocation6 + $0x148] sm:$0xff]
    %v112 = vld [vmem:[#allocation6 + $0x150] sm:$0xff]
    %v113 = vld [vmem:[#allocation6 + $0x158] sm:$0xff]
    %v114 = vld [vmem:[#allocation6 + $0x160] sm:$0xff]
    %v115 = vld [vmem:[#allocation6 + $0x168] sm:$0xff]
    %v116 = vld [vmem:[#allocation6 + $0x170] sm:$0xff]
    %v117 = vld [vmem:[#allocation6 + $0x178] sm:$0xff]
    %v118 = vld [vmem:[#allocation6 + $0x180] sm:$0xff]
    %v119 = vld [vmem:[#allocation6 + $0x188] sm:$0xff]
    %v120 = vld [vmem:[#allocation6 + $0x190] sm:$0xff]
    %v121 = vld [vmem:[#allocation6 + $0x198] sm:$0xff]
    %v122 = vld [vmem:[#allocation6 + $0x1a0] sm:$0xff]
    %v123 = vld [vmem:[#allocation6 + $0x1a8] sm:$0xff]
    %v124 = vld [vmem:[#allocation6 + $0x1b0] sm:$0xff]
    %v125 = vld [vmem:[#allocation6 + $0x1b8] sm:$0xff]
    %v126 = vld [vmem:[#allocation6 + $0x1c0] sm:$0xff]
    %v127 = vld [vmem:[#allocation6 + $0x1c8] sm:$0xff]
    %v128 = vld [vmem:[#allocation6 + $0x1d0] sm:$0xff]
    %v129 = vld [vmem:[#allocation6 + $0x1d8] sm:$0xff]
    %v130 = vld [vmem:[#allocation6 + $0x1e0] sm:$0xff]
    %v131 = vld [vmem:[#allocation6 + $0x1e8] sm:$0xff]
    %v132 = vld [vmem:[#allocation6 + $0x1f0] sm:$0xff]
    %v133 = vld [vmem:[#allocation6 + $0x1f8] sm:$0xff]
    %v134 = vld [vmem:[#allocation6 + $0x200] sm:$0xff]
    %v135 = vld [vmem:[#allocation6 + $0x208] sm:$0xff]
    %v136 = vld [vmem:[#allocation6 + $0x210] sm:$0xff]
    %v137 = vld [vmem:[#allocation6 + $0x218] sm:$0xff]
    %v138 = vld [vmem:[#allocation6 + $0x220] sm:$0xff]
    %v139 = vld [vmem:[#allocation6 + $0x228] sm:$0xff]
    %v140 = vld [vmem:[#allocation6 + $0x230] sm:$0xff]
    %v141 = vld [vmem:[#allocation6 + $0x238] sm:$0xff]
    %v142 = vld [vmem:[#allocation6 + $0x240] sm:$0xff]
    %v143 = vld [vmem:[#allocation6 + $0x248] sm:$0xff]
    %v144 = vld [vmem:[#allocation6 + $0x250] sm:$0xff]
    %v145 = vld [vmem:[#allocation6 + $0x258] sm:$0xff]
    %v146 = vld [vmem:[#allocation6 + $0x260] sm:$0xff]
    %v147 = vld [vmem:[#allocation6 + $0x268] sm:$0xff]
    %v148 = vld [vmem:[#allocation6 + $0x270] sm:$0xff]
    %v149 = vld [vmem:[#allocation6 + $0x278] sm:$0xff]
    %v150 = vld [vmem:[#allocation6 + $0x280] sm:$0xff]
    %v151 = vld [vmem:[#allocation6 + $0x288] sm:$0xff]
    %v152 = vld [vmem:[#allocation6 + $0x290] sm:$0xff]
    %v153 = vld [vmem:[#allocation6 + $0x298] sm:$0xff]
    %v154 = vld [vmem:[#allocation6 + $0x2a0] sm:$0xff]
    %v155 = vld [vmem:[#allocation6 + $0x2a8] sm:$0xff]
    %v156 = vld [vmem:[#allocation6 + $0x2b0] sm:$0xff]
    %v157 = vld [vmem:[#allocation6 + $0x2b8] sm:$0xff]
    %v158 = vld [vmem:[#allocation6 + $0x2c0] sm:$0xff]
    %v159 = vld [vmem:[#allocation6 + $0x2c8] sm:$0xff]
    %v160 = vld [vmem:[#allocation6 + $0x2d0] sm:$0xff]
    %v161 = vld [vmem:[#allocation6 + $0x2d8] sm:$0xff]
    %v162 = vld [vmem:[#allocation6 + $0x2e0] sm:$0xff]
    %v163 = vld [vmem:[#allocation6 + $0x2e8] sm:$0xff]
    %v164 = vld [vmem:[#allocation6 + $0x2f0] sm:$0xff]
    %v165 = vld [vmem:[#allocation6 + $0x2f8] sm:$0xff]
    %v166 = vld [vmem:[#allocation6 + $0x300] sm:$0xff]
    %v167 = vld [vmem:[#allocation6 + $0x308] sm:$0xff]
    %v168 = vld [vmem:[#allocation6 + $0x310] sm:$0xff]
    %v169 = vld [vmem:[#allocation6 + $0x318] sm:$0xff]
    %v170 = vld [vmem:[#allocation6 + $0x320] sm:$0xff]
    %v171 = vld [vmem:[#allocation6 + $0x328] sm:$0xff]
    %v172 = vld [vmem:[#allocation6 + $0x330] sm:$0xff]
    %v173 = vld [vmem:[#allocation6 + $0x338] sm:$0xff]
    %v174 = vld [vmem:[#allocation6 + $0x340] sm:$0xff]
    %v175 = vld [vmem:[#allocation6 + $0x348] sm:$0xff]
    %v176 = vld [vmem:[#allocation6 + $0x350] sm:$0xff]
    %v177 = vld [vmem:[#allocation6 + $0x358] sm:$0xff]
    %v178 = vld [vmem:[#allocation6 + $0x360] sm:$0xff]
    %v179 = vld [vmem:[#allocation6 + $0x368] sm:$0xff]
    %v180 = vld [vmem:[#allocation6 + $0x370] sm:$0xff]
    %v181 = vld [vmem:[#allocation6 + $0x378] sm:$0xff]
    %v182 = vld [vmem:[#allocation6 + $0x380] sm:$0xff]
    %v183 = vld [vmem:[#allocation6 + $0x388] sm:$0xff]
    %v184 = vld [vmem:[#allocation6 + $0x390] sm:$0xff]
    %v185 = vld [vmem:[#allocation6 + $0x398] sm:$0xff]
    %v186 = vld [vmem:[#allocation6 + $0x3a0] sm:$0xff]
    %v187 = vld [vmem:[#allocation6 + $0x3a8] sm:$0xff]
    %v188 = vld [vmem:[#allocation6 + $0x3b0] sm:$0xff]
    %v189 = vld [vmem:[#allocation6 + $0x3b8] sm:$0xff]
    %v190 = vld [vmem:[#allocation6 + $0x3c0] sm:$0xff]
    %v191 = vld [vmem:[#allocation6 + $0x3c8] sm:$0xff]
    %v192 = vld [vmem:[#allocation6 + $0x3d0] sm:$0xff]
    %v193 = vld [vmem:[#allocation6 + $0x3d8] sm:$0xff]
    %v194 = vld [vmem:[#allocation6 + $0x3e0] sm:$0xff]
    %v195 = vld [vmem:[#allocation6 + $0x3e8] sm:$0xff]
    %v196 = vld [vmem:[#allocation6 + $0x3f0] sm:$0xff]
    %v197 = vld [vmem:[#allocation6 + $0x3f8] sm:$0xff]
    %v198 = vld [vmem:[%s2] sm:$0xf]
    %v200 = vlaneseq
    %v201 = vshrl.u32 %v200, 7
    %v202 = vsub.s32 0, %v201
    %v203 = vrot.slane %v198, %v202
    %v204 = vlaneseq
    %v205 = vshrl.u32 %v204, 7
    %v206 = vsub.s32 1, %v205
    %v207 = vrot.slane %v198, %v206
    %v208 = vlaneseq
    %v209 = vshrl.u32 %v208, 7
    %v210 = vsub.s32 2, %v209
    %v211 = vrot.slane %v198, %v210
    %v212 = vlaneseq
    %v213 = vshrl.u32 %v212, 7
    %v214 = vsub.s32 3, %v213
    %v215 = vrot.slane %v198, %v214
    %v222 = vunpack.c.l.b16 %v68
    %v223 = vunpack.c.h.b16 %v68
    %v224 = vunpack.c.l.b16 %v69
    %v225 = vunpack.c.h.b16 %v69
    %v226 = vpack.c.b16 %v222, %v222
    %v227 = vpack.c.b16 %v223, %v223
    %v228 = vpack.c.b16 %v224, %v224
    %v229 = vpack.c.b16 %v225, %v225
    %v362 = vunpack.c.l.b16 %v70
    %v363 = vunpack.c.h.b16 %v70
    %v364 = vunpack.c.l.b16 %v71
    %v365 = vunpack.c.h.b16 %v71
    %v366 = vunpack.c.l.b16 %v72
    %v367 = vunpack.c.h.b16 %v72
    %v368 = vunpack.c.l.b16 %v73
    %v369 = vunpack.c.h.b16 %v73
    %v370 = vunpack.c.l.b16 %v74
    %v371 = vunpack.c.h.b16 %v74
    %v372 = vunpack.c.l.b16 %v75
    %v373 = vunpack.c.h.b16 %v75
    %v374 = vunpack.c.l.b16 %v76
    %v375 = vunpack.c.h.b16 %v76
    %v376 = vunpack.c.l.b16 %v77
    %v377 = vunpack.c.h.b16 %v77
    %v378 = vunpack.c.l.b16 %v78
    %v379 = vunpack.c.h.b16 %v78
    %v380 = vunpack.c.l.b16 %v79
    %v381 = vunpack.c.h.b16 %v79
    %v382 = vunpack.c.l.b16 %v80
    %v383 = vunpack.c.h.b16 %v80
    %v384 = vunpack.c.l.b16 %v81
    %v385 = vunpack.c.h.b16 %v81
    %v386 = vunpack.c.l.b16 %v82
    %v387 = vunpack.c.h.b16 %v82
    %v388 = vunpack.c.l.b16 %v83
    %v389 = vunpack.c.h.b16 %v83
    %v390 = vunpack.c.l.b16 %v84
    %v391 = vunpack.c.h.b16 %v84
    %v392 = vunpack.c.l.b16 %v85
    %v393 = vunpack.c.h.b16 %v85
    %v394 = vunpack.c.l.b16 %v86
    %v395 = vunpack.c.h.b16 %v86
    %v396 = vunpack.c.l.b16 %v87
    %v397 = vunpack.c.h.b16 %v87
    %v398 = vunpack.c.l.b16 %v88
    %v399 = vunpack.c.h.b16 %v88
    %v400 = vunpack.c.l.b16 %v89
    %v401 = vunpack.c.h.b16 %v89
    %v402 = vunpack.c.l.b16 %v90
    %v403 = vunpack.c.h.b16 %v90
    %v404 = vunpack.c.l.b16 %v91
    %v405 = vunpack.c.h.b16 %v91
    %v406 = vunpack.c.l.b16 %v92
    %v407 = vunpack.c.h.b16 %v92
    %v408 = vunpack.c.l.b16 %v93
    %v409 = vunpack.c.h.b16 %v93
    %v410 = vunpack.c.l.b16 %v94
    %v411 = vunpack.c.h.b16 %v94
    %v412 = vunpack.c.l.b16 %v95
    %v413 = vunpack.c.h.b16 %v95
    %v414 = vunpack.c.l.b16 %v96
    %v415 = vunpack.c.h.b16 %v96
    %v416 = vunpack.c.l.b16 %v97
    %v417 = vunpack.c.h.b16 %v97
    %v418 = vunpack.c.l.b16 %v98
    %v419 = vunpack.c.h.b16 %v98
    %v420 = vunpack.c.l.b16 %v99
    %v421 = vunpack.c.h.b16 %v99
    %v422 = vunpack.c.l.b16 %v100
    %v423 = vunpack.c.h.b16 %v100
    %v424 = vunpack.c.l.b16 %v101
    %v425 = vunpack.c.h.b16 %v101
    %v426 = vunpack.c.l.b16 %v102
    %v427 = vunpack.c.h.b16 %v102
    %v428 = vunpack.c.l.b16 %v103
    %v429 = vunpack.c.h.b16 %v103
    %v430 = vunpack.c.l.b16 %v104
    %v431 = vunpack.c.h.b16 %v104
    %v432 = vunpack.c.l.b16 %v105
    %v433 = vunpack.c.h.b16 %v105
    %v434 = vunpack.c.l.b16 %v106
    %v435 = vunpack.c.h.b16 %v106
    %v436 = vunpack.c.l.b16 %v107
    %v437 = vunpack.c.h.b16 %v107
    %v438 = vunpack.c.l.b16 %v108
    %v439 = vunpack.c.h.b16 %v108
    %v440 = vunpack.c.l.b16 %v109
    %v441 = vunpack.c.h.b16 %v109
    %v442 = vunpack.c.l.b16 %v110
    %v443 = vunpack.c.h.b16 %v110
    %v444 = vunpack.c.l.b16 %v111
    %v445 = vunpack.c.h.b16 %v111
    %v446 = vunpack.c.l.b16 %v112
    %v447 = vunpack.c.h.b16 %v112
    %v448 = vunpack.c.l.b16 %v113
    %v449 = vunpack.c.h.b16 %v113
    %v450 = vunpack.c.l.b16 %v114
    %v451 = vunpack.c.h.b16 %v114
    %v452 = vunpack.c.l.b16 %v115
    %v453 = vunpack.c.h.b16 %v115
    %v454 = vunpack.c.l.b16 %v116
    %v455 = vunpack.c.h.b16 %v116
    %v456 = vunpack.c.l.b16 %v117
    %v457 = vunpack.c.h.b16 %v117
    %v458 = vunpack.c.l.b16 %v118
    %v459 = vunpack.c.h.b16 %v118
    %v460 = vunpack.c.l.b16 %v119
    %v461 = vunpack.c.h.b16 %v119
    %v462 = vunpack.c.l.b16 %v120
    %v463 = vunpack.c.h.b16 %v120
    %v464 = vunpack.c.l.b16 %v121
    %v465 = vunpack.c.h.b16 %v121
    %v466 = vunpack.c.l.b16 %v122
    %v467 = vunpack.c.h.b16 %v122
    %v468 = vunpack.c.l.b16 %v123
    %v469 = vunpack.c.h.b16 %v123
    %v470 = vunpack.c.l.b16 %v124
    %v471 = vunpack.c.h.b16 %v124
    %v472 = vunpack.c.l.b16 %v125
    %v473 = vunpack.c.h.b16 %v125
    %v474 = vunpack.c.l.b16 %v126
    %v475 = vunpack.c.h.b16 %v126
    %v476 = vunpack.c.l.b16 %v127
    %v477 = vunpack.c.h.b16 %v127
    %v478 = vunpack.c.l.b16 %v128
    %v479 = vunpack.c.h.b16 %v128
    %v480 = vunpack.c.l.b16 %v129
    %v481 = vunpack.c.h.b16 %v129
    %v482 = vunpack.c.l.b16 %v130
    %v483 = vunpack.c.h.b16 %v130
    %v484 = vunpack.c.l.b16 %v131
    %v485 = vunpack.c.h.b16 %v131
    %v486 = vunpack.c.l.b16 %v132
    %v487 = vunpack.c.h.b16 %v132
    %v488 = vunpack.c.l.b16 %v133
    %v489 = vunpack.c.h.b16 %v133
    %v490 = vunpack.c.l.b16 %v134
    %v491 = vunpack.c.h.b16 %v134
    %v492 = vunpack.c.l.b16 %v135
    %v493 = vunpack.c.h.b16 %v135
    %v494 = vunpack.c.l.b16 %v136
    %v495 = vunpack.c.h.b16 %v136
    %v496 = vunpack.c.l.b16 %v137
    %v497 = vunpack.c.h.b16 %v137
    %v498 = vunpack.c.l.b16 %v138
    %v499 = vunpack.c.h.b16 %v138
    %v500 = vunpack.c.l.b16 %v139
    %v501 = vunpack.c.h.b16 %v139
    %v502 = vunpack.c.l.b16 %v140
    %v503 = vunpack.c.h.b16 %v140
    %v504 = vunpack.c.l.b16 %v141
    %v505 = vunpack.c.h.b16 %v141
    %v506 = vunpack.c.l.b16 %v142
    %v507 = vunpack.c.h.b16 %v142
    %v508 = vunpack.c.l.b16 %v143
    %v509 = vunpack.c.h.b16 %v143
    %v510 = vunpack.c.l.b16 %v144
    %v511 = vunpack.c.h.b16 %v144
    %v512 = vunpack.c.l.b16 %v145
    %v513 = vunpack.c.h.b16 %v145
    %v514 = vunpack.c.l.b16 %v146
    %v515 = vunpack.c.h.b16 %v146
    %v516 = vunpack.c.l.b16 %v147
    %v517 = vunpack.c.h.b16 %v147
    %v518 = vunpack.c.l.b16 %v148
    %v519 = vunpack.c.h.b16 %v148
    %v520 = vunpack.c.l.b16 %v149
    %v521 = vunpack.c.h.b16 %v149
    %v522 = vunpack.c.l.b16 %v150
    %v523 = vunpack.c.h.b16 %v150
    %v524 = vunpack.c.l.b16 %v151
    %v525 = vunpack.c.h.b16 %v151
    %v526 = vunpack.c.l.b16 %v152
    %v527 = vunpack.c.h.b16 %v152
    %v528 = vunpack.c.l.b16 %v153
    %v529 = vunpack.c.h.b16 %v153
    %v530 = vunpack.c.l.b16 %v154
    %v531 = vunpack.c.h.b16 %v154
    %v532 = vunpack.c.l.b16 %v155
    %v533 = vunpack.c.h.b16 %v155
    %v534 = vunpack.c.l.b16 %v156
    %v535 = vunpack.c.h.b16 %v156
    %v536 = vunpack.c.l.b16 %v157
    %v537 = vunpack.c.h.b16 %v157
    %v538 = vunpack.c.l.b16 %v158
    %v539 = vunpack.c.h.b16 %v158
    %v540 = vunpack.c.l.b16 %v159
    %v541 = vunpack.c.h.b16 %v159
    %v542 = vunpack.c.l.b16 %v160
    %v543 = vunpack.c.h.b16 %v160
    %v544 = vunpack.c.l.b16 %v161
    %v545 = vunpack.c.h.b16 %v161
    %v546 = vunpack.c.l.b16 %v162
    %v547 = vunpack.c.h.b16 %v162
    %v548 = vunpack.c.l.b16 %v163
    %v549 = vunpack.c.h.b16 %v163
    %v550 = vunpack.c.l.b16 %v164
    %v551 = vunpack.c.h.b16 %v164
    %v552 = vunpack.c.l.b16 %v165
    %v553 = vunpack.c.h.b16 %v165
    %v554 = vunpack.c.l.b16 %v166
    %v555 = vunpack.c.h.b16 %v166
    %v556 = vunpack.c.l.b16 %v167
    %v557 = vunpack.c.h.b16 %v167
    %v558 = vunpack.c.l.b16 %v168
    %v559 = vunpack.c.h.b16 %v168
    %v560 = vunpack.c.l.b16 %v169
    %v561 = vunpack.c.h.b16 %v169
    %v562 = vunpack.c.l.b16 %v170
    %v563 = vunpack.c.h.b16 %v170
    %v564 = vunpack.c.l.b16 %v171
    %v565 = vunpack.c.h.b16 %v171
    %v566 = vunpack.c.l.b16 %v172
    %v567 = vunpack.c.h.b16 %v172
    %v568 = vunpack.c.l.b16 %v173
    %v569 = vunpack.c.h.b16 %v173
    %v570 = vunpack.c.l.b16 %v174
    %v571 = vunpack.c.h.b16 %v174
    %v572 = vunpack.c.l.b16 %v175
    %v573 = vunpack.c.h.b16 %v175
    %v574 = vunpack.c.l.b16 %v176
    %v575 = vunpack.c.h.b16 %v176
    %v576 = vunpack.c.l.b16 %v177
    %v577 = vunpack.c.h.b16 %v177
    %v578 = vunpack.c.l.b16 %v178
    %v579 = vunpack.c.h.b16 %v178
    %v580 = vunpack.c.l.b16 %v179
    %v581 = vunpack.c.h.b16 %v179
    %v582 = vunpack.c.l.b16 %v180
    %v583 = vunpack.c.h.b16 %v180
    %v584 = vunpack.c.l.b16 %v181
    %v585 = vunpack.c.h.b16 %v181
    %v586 = vunpack.c.l.b16 %v182
    %v587 = vunpack.c.h.b16 %v182
    %v588 = vunpack.c.l.b16 %v183
    %v589 = vunpack.c.h.b16 %v183
    %v590 = vunpack.c.l.b16 %v184
    %v591 = vunpack.c.h.b16 %v184
    %v592 = vunpack.c.l.b16 %v185
    %v593 = vunpack.c.h.b16 %v185
    %v594 = vunpack.c.l.b16 %v186
    %v595 = vunpack.c.h.b16 %v186
    %v596 = vunpack.c.l.b16 %v187
    %v597 = vunpack.c.h.b16 %v187
    %v598 = vunpack.c.l.b16 %v188
    %v599 = vunpack.c.h.b16 %v188
    %v600 = vunpack.c.l.b16 %v189
    %v601 = vunpack.c.h.b16 %v189
    %v602 = vunpack.c.l.b16 %v190
    %v603 = vunpack.c.h.b16 %v190
    %v604 = vunpack.c.l.b16 %v191
    %v605 = vunpack.c.h.b16 %v191
    %v606 = vunpack.c.l.b16 %v192
    %v607 = vunpack.c.h.b16 %v192
    %v608 = vunpack.c.l.b16 %v193
    %v609 = vunpack.c.h.b16 %v193
    %v610 = vunpack.c.l.b16 %v194
    %v611 = vunpack.c.h.b16 %v194
    %v612 = vunpack.c.l.b16 %v195
    %v613 = vunpack.c.h.b16 %v195
    %v614 = vunpack.c.l.b16 %v196
    %v615 = vunpack.c.h.b16 %v196
    %v616 = vunpack.c.l.b16 %v197
    %v617 = vunpack.c.h.b16 %v197
    %v618 = vpack.c.b16 %v366, %v362
    %v619 = vpack.c.b16 %v367, %v363
    %v620 = vpack.c.b16 %v368, %v364
    %v621 = vpack.c.b16 %v369, %v365
    %v622 = vpack.c.b16 %v374, %v370
    %v623 = vpack.c.b16 %v375, %v371
    %v624 = vpack.c.b16 %v376, %v372
    %v625 = vpack.c.b16 %v377, %v373
    %v626 = vpack.c.b16 %v382, %v378
    %v627 = vpack.c.b16 %v383, %v379
    %v628 = vpack.c.b16 %v384, %v380
    %v629 = vpack.c.b16 %v385, %v381
    %v630 = vpack.c.b16 %v390, %v386
    %v631 = vpack.c.b16 %v391, %v387
    %v632 = vpack.c.b16 %v392, %v388
    %v633 = vpack.c.b16 %v393, %v389
    %v634 = vpack.c.b16 %v398, %v394
    %v635 = vpack.c.b16 %v399, %v395
    %v636 = vpack.c.b16 %v400, %v396
    %v637 = vpack.c.b16 %v401, %v397
    %v638 = vpack.c.b16 %v406, %v402
    %v639 = vpack.c.b16 %v407, %v403
    %v640 = vpack.c.b16 %v408, %v404
    %v641 = vpack.c.b16 %v409, %v405
    %v642 = vpack.c.b16 %v414, %v410
    %v643 = vpack.c.b16 %v415, %v411
    %v644 = vpack.c.b16 %v416, %v412
    %v645 = vpack.c.b16 %v417, %v413
    %v646 = vpack.c.b16 %v422, %v418
    %v647 = vpack.c.b16 %v423, %v419
    %v648 = vpack.c.b16 %v424, %v420
    %v649 = vpack.c.b16 %v425, %v421
    %v650 = vpack.c.b16 %v430, %v426
    %v651 = vpack.c.b16 %v431, %v427
    %v652 = vpack.c.b16 %v432, %v428
    %v653 = vpack.c.b16 %v433, %v429
    %v654 = vpack.c.b16 %v438, %v434
    %v655 = vpack.c.b16 %v439, %v435
    %v656 = vpack.c.b16 %v440, %v436
    %v657 = vpack.c.b16 %v441, %v437
    %v658 = vpack.c.b16 %v446, %v442
    %v659 = vpack.c.b16 %v447, %v443
    %v660 = vpack.c.b16 %v448, %v444
    %v661 = vpack.c.b16 %v449, %v445
    %v662 = vpack.c.b16 %v454, %v450
    %v663 = vpack.c.b16 %v455, %v451
    %v664 = vpack.c.b16 %v456, %v452
    %v665 = vpack.c.b16 %v457, %v453
    %v666 = vpack.c.b16 %v462, %v458
    %v667 = vpack.c.b16 %v463, %v459
    %v668 = vpack.c.b16 %v464, %v460
    %v669 = vpack.c.b16 %v465, %v461
    %v670 = vpack.c.b16 %v470, %v466
    %v671 = vpack.c.b16 %v471, %v467
    %v672 = vpack.c.b16 %v472, %v468
    %v673 = vpack.c.b16 %v473, %v469
    %v674 = vpack.c.b16 %v478, %v474
    %v675 = vpack.c.b16 %v479, %v475
    %v676 = vpack.c.b16 %v480, %v476
    %v677 = vpack.c.b16 %v481, %v477
    %v678 = vpack.c.b16 %v486, %v482
    %v679 = vpack.c.b16 %v487, %v483
    %v680 = vpack.c.b16 %v488, %v484
    %v681 = vpack.c.b16 %v489, %v485
    %v682 = vpack.c.b16 %v494, %v490
    %v683 = vpack.c.b16 %v495, %v491
    %v684 = vpack.c.b16 %v496, %v492
    %v685 = vpack.c.b16 %v497, %v493
    %v686 = vpack.c.b16 %v502, %v498
    %v687 = vpack.c.b16 %v503, %v499
    %v688 = vpack.c.b16 %v504, %v500
    %v689 = vpack.c.b16 %v505, %v501
    %v690 = vpack.c.b16 %v510, %v506
    %v691 = vpack.c.b16 %v511, %v507
    %v692 = vpack.c.b16 %v512, %v508
    %v693 = vpack.c.b16 %v513, %v509
    %v694 = vpack.c.b16 %v518, %v514
    %v695 = vpack.c.b16 %v519, %v515
    %v696 = vpack.c.b16 %v520, %v516
    %v697 = vpack.c.b16 %v521, %v517
    %v698 = vpack.c.b16 %v526, %v522
    %v699 = vpack.c.b16 %v527, %v523
    %v700 = vpack.c.b16 %v528, %v524
    %v701 = vpack.c.b16 %v529, %v525
    %v702 = vpack.c.b16 %v534, %v530
    %v703 = vpack.c.b16 %v535, %v531
    %v704 = vpack.c.b16 %v536, %v532
    %v705 = vpack.c.b16 %v537, %v533
    %v706 = vpack.c.b16 %v542, %v538
    %v707 = vpack.c.b16 %v543, %v539
    %v708 = vpack.c.b16 %v544, %v540
    %v709 = vpack.c.b16 %v545, %v541
    %v710 = vpack.c.b16 %v550, %v546
    %v711 = vpack.c.b16 %v551, %v547
    %v712 = vpack.c.b16 %v552, %v548
    %v713 = vpack.c.b16 %v553, %v549
    %v714 = vpack.c.b16 %v558, %v554
    %v715 = vpack.c.b16 %v559, %v555
    %v716 = vpack.c.b16 %v560, %v556
    %v717 = vpack.c.b16 %v561, %v557
    %v718 = vpack.c.b16 %v566, %v562
    %v719 = vpack.c.b16 %v567, %v563
    %v720 = vpack.c.b16 %v568, %v564
    %v721 = vpack.c.b16 %v569, %v565
    %v722 = vpack.c.b16 %v574, %v570
    %v723 = vpack.c.b16 %v575, %v571
    %v724 = vpack.c.b16 %v576, %v572
    %v725 = vpack.c.b16 %v577, %v573
    %v726 = vpack.c.b16 %v582, %v578
    %v727 = vpack.c.b16 %v583, %v579
    %v728 = vpack.c.b16 %v584, %v580
    %v729 = vpack.c.b16 %v585, %v581
    %v730 = vpack.c.b16 %v590, %v586
    %v731 = vpack.c.b16 %v591, %v587
    %v732 = vpack.c.b16 %v592, %v588
    %v733 = vpack.c.b16 %v593, %v589
    %v734 = vpack.c.b16 %v598, %v594
    %v735 = vpack.c.b16 %v599, %v595
    %v736 = vpack.c.b16 %v600, %v596
    %v737 = vpack.c.b16 %v601, %v597
    %v738 = vpack.c.b16 %v606, %v602
    %v739 = vpack.c.b16 %v607, %v603
    %v740 = vpack.c.b16 %v608, %v604
    %v741 = vpack.c.b16 %v609, %v605
    %v742 = vpack.c.b16 %v614, %v610
    %v743 = vpack.c.b16 %v615, %v611
    %v744 = vpack.c.b16 %v616, %v612
    %v745 = vpack.c.b16 %v617, %v613
    %874 = vmatprep.subr.bf16.mxu0 %v619
    %875 = vmatpush1.bf16.msra.mxu0 %v618
    %876 = vmatprep.subr.bf16.mxu0 %v623
    %877 = vmatpush1.bf16.msra.mxu0 %v622
    %878 = vmatprep.subr.bf16.mxu0 %v627
    %879 = vmatpush1.bf16.msra.mxu0 %v626
    %880 = vmatprep.subr.bf16.mxu0 %v631
    %881 = vmatpush1.bf16.msra.mxu0 %v630
    %882 = vmatprep.subr.bf16.mxu0 %v635
    %883 = vmatpush1.bf16.msra.mxu0 %v634
    %884 = vmatprep.subr.bf16.mxu0 %v639
    %885 = vmatpush1.bf16.msra.mxu0 %v638
    %886 = vmatprep.subr.bf16.mxu0 %v643
    %887 = vmatpush1.bf16.msra.mxu0 %v642
    %888 = vmatprep.subr.bf16.mxu0 %v647
    %889 = vmatpush1.bf16.msra.mxu0 %v646
    %890 = vmatprep.subr.bf16.mxu0 %v651
    %891 = vmatpush1.bf16.msra.mxu0 %v650
    %892 = vmatprep.subr.bf16.mxu0 %v655
    %893 = vmatpush1.bf16.msra.mxu0 %v654
    %894 = vmatprep.subr.bf16.mxu0 %v659
    %895 = vmatpush1.bf16.msra.mxu0 %v658
    %896 = vmatprep.subr.bf16.mxu0 %v663
    %897 = vmatpush1.bf16.msra.mxu0 %v662
    %898 = vmatprep.subr.bf16.mxu0 %v667
    %899 = vmatpush1.bf16.msra.mxu0 %v666
    %900 = vmatprep.subr.bf16.mxu0 %v671
    %901 = vmatpush1.bf16.msra.mxu0 %v670
    %902 = vmatprep.subr.bf16.mxu0 %v675
    %903 = vmatpush1.bf16.msra.mxu0 %v674
    %904 = vmatprep.subr.bf16.mxu0 %v679
    %905 = vmatpush1.bf16.msra.mxu0 %v678
    %906 = vmatprep.mubr.bf16.mxu0 %v227
    %907 = vmatmul.mubr.bf16.gmra.mrb[0].mxu0 %v226
    %v908 = vpop.f32.mrb[0].mxu0
    %v909 = vadd.f32 %v203, %v908
    %v910 = vpop.f32.mrb[0].mxu0
    %v911 = vadd.f32 %v207, %v910
    %v912 = vpop.f32.mrb[0].mxu0
    %v913 = vpop.f32.mrb[0].mxu0
    %914 = vdwg.mxu0
    %915 = vmatprep.subr.bf16.mxu0 %v683
    %916 = vmatpush1.bf16.msra.mxu0 %v682
    %917 = vmatprep.subr.bf16.mxu0 %v687
    %918 = vmatpush1.bf16.msra.mxu0 %v686
    %919 = vmatprep.subr.bf16.mxu0 %v691
    %920 = vmatpush1.bf16.msra.mxu0 %v690
    %921 = vmatprep.subr.bf16.mxu0 %v695
    %922 = vmatpush1.bf16.msra.mxu0 %v694
    %923 = vmatprep.subr.bf16.mxu0 %v699
    %924 = vmatpush1.bf16.msra.mxu0 %v698
    %925 = vmatprep.subr.bf16.mxu0 %v703
    %926 = vmatpush1.bf16.msra.mxu0 %v702
    %927 = vmatprep.subr.bf16.mxu0 %v707
    %928 = vmatpush1.bf16.msra.mxu0 %v706
    %929 = vmatprep.subr.bf16.mxu0 %v711
    %930 = vmatpush1.bf16.msra.mxu0 %v710
    %931 = vmatprep.subr.bf16.mxu0 %v715
    %932 = vmatpush1.bf16.msra.mxu0 %v714
    %933 = vmatprep.subr.bf16.mxu0 %v719
    %934 = vmatpush1.bf16.msra.mxu0 %v718
    %935 = vmatprep.subr.bf16.mxu0 %v723
    %936 = vmatpush1.bf16.msra.mxu0 %v722
    %937 = vmatprep.subr.bf16.mxu0 %v727
    %938 = vmatpush1.bf16.msra.mxu0 %v726
    %939 = vmatprep.subr.bf16.mxu0 %v731
    %940 = vmatpush1.bf16.msra.mxu0 %v730
    %941 = vmatprep.subr.bf16.mxu0 %v735
    %942 = vmatpush1.bf16.msra.mxu0 %v734
    %943 = vmatprep.subr.bf16.mxu0 %v739
    %944 = vmatpush1.bf16.msra.mxu0 %v738
    %945 = vmatprep.subr.bf16.mxu0 %v743
    %946 = vmatpush1.bf16.msra.mxu0 %v742
    %947 = vmatprep.mubr.bf16.mxu0 %v229
    %948 = vmatmul.mubr.bf16.gmra.mrb[0].mxu0 %v228
    %v949 = vpop.f32.mrb[0].mxu0
    %v950 = vadd.f32 %v909, %v949
    %v951 = vpop.f32.mrb[0].mxu0
    %v952 = vadd.f32 %v911, %v951
    %v953 = vpop.f32.mrb[0].mxu0
    %v954 = vpop.f32.mrb[0].mxu0
    %955 = vdwg.mxu0
    %956 = vmatprep.subr.bf16.mxu0 %v621
    %957 = vmatpush1.bf16.msra.mxu0 %v620
    %958 = vmatprep.subr.bf16.mxu0 %v625
    %959 = vmatpush1.bf16.msra.mxu0 %v624
    %960 = vmatprep.subr.bf16.mxu0 %v629
    %961 = vmatpush1.bf16.msra.mxu0 %v628
    %962 = vmatprep.subr.bf16.mxu0 %v633
    %963 = vmatpush1.bf16.msra.mxu0 %v632
    %964 = vmatprep.subr.bf16.mxu0 %v637
    %965 = vmatpush1.bf16.msra.mxu0 %v636
    %966 = vmatprep.subr.bf16.mxu0 %v641
    %967 = vmatpush1.bf16.msra.mxu0 %v640
    %968 = vmatprep.subr.bf16.mxu0 %v645
    %969 = vmatpush1.bf16.msra.mxu0 %v644
    %970 = vmatprep.subr.bf16.mxu0 %v649
    %971 = vmatpush1.bf16.msra.mxu0 %v648
    %972 = vmatprep.subr.bf16.mxu0 %v653
    %973 = vmatpush1.bf16.msra.mxu0 %v652
    %974 = vmatprep.subr.bf16.mxu0 %v657
    %975 = vmatpush1.bf16.msra.mxu0 %v656
    %976 = vmatprep.subr.bf16.mxu0 %v661
    %977 = vmatpush1.bf16.msra.mxu0 %v660
    %978 = vmatprep.subr.bf16.mxu0 %v665
    %979 = vmatpush1.bf16.msra.mxu0 %v664
    %980 = vmatprep.subr.bf16.mxu0 %v669
    %981 = vmatpush1.bf16.msra.mxu0 %v668
    %982 = vmatprep.subr.bf16.mxu0 %v673
    %983 = vmatpush1.bf16.msra.mxu0 %v672
    %984 = vmatprep.subr.bf16.mxu0 %v677
    %985 = vmatpush1.bf16.msra.mxu0 %v676
    %986 = vmatprep.subr.bf16.mxu0 %v681
    %987 = vmatpush1.bf16.msra.mxu0 %v680
    %988 = vmatprep.mubr.bf16.mxu0 %v227
    %989 = vmatmul.mubr.bf16.gmra.mrb[0].mxu0 %v226
    %v990 = vpop.f32.mrb[0].mxu0
    %v991 = vadd.f32 %v211, %v990
    %v992 = vpop.f32.mrb[0].mxu0
    %v993 = vadd.f32 %v215, %v992
    %v994 = vpop.f32.mrb[0].mxu0
    %v995 = vpop.f32.mrb[0].mxu0
    %996 = vdwg.mxu0
    %997 = vmatprep.subr.bf16.mxu0 %v685
    %998 = vmatpush1.bf16.msra.mxu0 %v684
    %999 = vmatprep.subr.bf16.mxu0 %v689
    %1000 = vmatpush1.bf16.msra.mxu0 %v688
    %1001 = vmatprep.subr.bf16.mxu0 %v693
    %1002 = vmatpush1.bf16.msra.mxu0 %v692
    %1003 = vmatprep.subr.bf16.mxu0 %v697
    %1004 = vmatpush1.bf16.msra.mxu0 %v696
    %1005 = vmatprep.subr.bf16.mxu0 %v701
    %1006 = vmatpush1.bf16.msra.mxu0 %v700
    %1007 = vmatprep.subr.bf16.mxu0 %v705
    %1008 = vmatpush1.bf16.msra.mxu0 %v704
    %1009 = vmatprep.subr.bf16.mxu0 %v709
    %1010 = vmatpush1.bf16.msra.mxu0 %v708
    %1011 = vmatprep.subr.bf16.mxu0 %v713
    %1012 = vmatpush1.bf16.msra.mxu0 %v712
    %1013 = vmatprep.subr.bf16.mxu0 %v717
    %1014 = vmatpush1.bf16.msra.mxu0 %v716
    %1015 = vmatprep.subr.bf16.mxu0 %v721
    %1016 = vmatpush1.bf16.msra.mxu0 %v720
    %1017 = vmatprep.subr.bf16.mxu0 %v725
    %1018 = vmatpush1.bf16.msra.mxu0 %v724
    %1019 = vmatprep.subr.bf16.mxu0 %v729
    %1020 = vmatpush1.bf16.msra.mxu0 %v728
    %1021 = vmatprep.subr.bf16.mxu0 %v733
    %1022 = vmatpush1.bf16.msra.mxu0 %v732
    %1023 = vmatprep.subr.bf16.mxu0 %v737
    %1024 = vmatpush1.bf16.msra.mxu0 %v736
    %1025 = vmatprep.subr.bf16.mxu0 %v741
    %1026 = vmatpush1.bf16.msra.mxu0 %v740
    %1027 = vmatprep.subr.bf16.mxu0 %v745
    %1028 = vmatpush1.bf16.msra.mxu0 %v744
    %1029 = vmatprep.mubr.bf16.mxu0 %v229
    %1030 = vmatmul.mubr.bf16.gmra.mrb[0].mxu0 %v228
    %v1031 = vpop.f32.mrb[0].mxu0
    %v1032 = vadd.f32 %v991, %v1031
    %v1033 = vpop.f32.mrb[0].mxu0
    %v1034 = vadd.f32 %v993, %v1033
    %v1035 = vpop.f32.mrb[0].mxu0
    %v1036 = vpop.f32.mrb[0].mxu0
    %1037 = vdwg.mxu0
    %v1038 = vmul.f32 %v950, 0.2
    %v1039 = vmul.f32 %v952, 0.2
    %v1040 = vmul.f32 %v1032, 0.2
    %v1041 = vmul.f32 %v1034, 0.2
    %v1042 = vmax.f32 %v950, %v1038
    %v1043 = vmax.f32 %v952, %v1039
    %v1044 = vmax.f32 %v1032, %v1040
    %v1045 = vmax.f32 %v1034, %v1041
    %v1046 = vpack.c.bf16 %v1042, %v1042
    %v1047 = vpack.c.bf16 %v1043, %v1043
    %v1048 = vpack.c.bf16 %v1044, %v1044
    %v1049 = vpack.c.bf16 %v1045, %v1045
    %v1050 = vld [vmem:[#allocation8] sm:$0xff]
    %v1051 = vld [vmem:[#allocation8 + $0x8] sm:$0xff]
    %v1052 = vld [vmem:[#allocation8 + $0x10] sm:$0xff]
    %v1053 = vld [vmem:[#allocation8 + $0x18] sm:$0xff]
    %v1054 = vld [vmem:[#allocation8 + $0x20] sm:$0xff]
    %v1055 = vld [vmem:[#allocation8 + $0x28] sm:$0xff]
    %v1056 = vld [vmem:[#allocation8 + $0x30] sm:$0xff]
    %v1057 = vld [vmem:[#allocation8 + $0x38] sm:$0xff]
    %v1058 = vld [vmem:[#allocation8 + $0x40] sm:$0xff]
    %v1059 = vld [vmem:[#allocation8 + $0x48] sm:$0xff]
    %v1060 = vld [vmem:[#allocation8 + $0x50] sm:$0xff]
    %v1061 = vld [vmem:[#allocation8 + $0x58] sm:$0xff]
    %v1062 = vld [vmem:[#allocation8 + $0x60] sm:$0xff]
    %v1063 = vld [vmem:[#allocation8 + $0x68] sm:$0xff]
    %v1064 = vld [vmem:[#allocation8 + $0x70] sm:$0xff]
    %v1065 = vld [vmem:[#allocation8 + $0x78] sm:$0xff]
    %v1066 = vld [vmem:[#allocation8 + $0x80] sm:$0xff]
    %v1067 = vld [vmem:[#allocation8 + $0x88] sm:$0xff]
    %v1068 = vld [vmem:[#allocation8 + $0x90] sm:$0xff]
    %v1069 = vld [vmem:[#allocation8 + $0x98] sm:$0xff]
    %v1070 = vld [vmem:[#allocation8 + $0xa0] sm:$0xff]
    %v1071 = vld [vmem:[#allocation8 + $0xa8] sm:$0xff]
    %v1072 = vld [vmem:[#allocation8 + $0xb0] sm:$0xff]
    %v1073 = vld [vmem:[#allocation8 + $0xb8] sm:$0xff]
    %v1074 = vld [vmem:[#allocation8 + $0xc0] sm:$0xff]
    %v1075 = vld [vmem:[#allocation8 + $0xc8] sm:$0xff]
    %v1076 = vld [vmem:[#allocation8 + $0xd0] sm:$0xff]
    %v1077 = vld [vmem:[#allocation8 + $0xd8] sm:$0xff]
    %v1078 = vld [vmem:[#allocation8 + $0xe0] sm:$0xff]
    %v1079 = vld [vmem:[#allocation8 + $0xe8] sm:$0xff]
    %v1080 = vld [vmem:[#allocation8 + $0xf0] sm:$0xff]
    %v1081 = vld [vmem:[#allocation8 + $0xf8] sm:$0xff]
    %v1082 = vld [vmem:[#allocation8 + $0x100] sm:$0xff]
    %v1083 = vld [vmem:[#allocation8 + $0x108] sm:$0xff]
    %v1084 = vld [vmem:[#allocation8 + $0x110] sm:$0xff]
    %v1085 = vld [vmem:[#allocation8 + $0x118] sm:$0xff]
    %v1086 = vld [vmem:[#allocation8 + $0x120] sm:$0xff]
    %v1087 = vld [vmem:[#allocation8 + $0x128] sm:$0xff]
    %v1088 = vld [vmem:[#allocation8 + $0x130] sm:$0xff]
    %v1089 = vld [vmem:[#allocation8 + $0x138] sm:$0xff]
    %v1090 = vld [vmem:[#allocation8 + $0x140] sm:$0xff]
    %v1091 = vld [vmem:[#allocation8 + $0x148] sm:$0xff]
    %v1092 = vld [vmem:[#allocation8 + $0x150] sm:$0xff]
    %v1093 = vld [vmem:[#allocation8 + $0x158] sm:$0xff]
    %v1094 = vld [vmem:[#allocation8 + $0x160] sm:$0xff]
    %v1095 = vld [vmem:[#allocation8 + $0x168] sm:$0xff]
    %v1096 = vld [vmem:[#allocation8 + $0x170] sm:$0xff]
    %v1097 = vld [vmem:[#allocation8 + $0x178] sm:$0xff]
    %v1098 = vld [vmem:[#allocation8 + $0x180] sm:$0xff]
    %v1099 = vld [vmem:[#allocation8 + $0x188] sm:$0xff]
    %v1100 = vld [vmem:[#allocation8 + $0x190] sm:$0xff]
    %v1101 = vld [vmem:[#allocation8 + $0x198] sm:$0xff]
    %v1102 = vld [vmem:[#allocation8 + $0x1a0] sm:$0xff]
    %v1103 = vld [vmem:[#allocation8 + $0x1a8] sm:$0xff]
    %v1104 = vld [vmem:[#allocation8 + $0x1b0] sm:$0xff]
    %v1105 = vld [vmem:[#allocation8 + $0x1b8] sm:$0xff]
    %v1106 = vld [vmem:[#allocation8 + $0x1c0] sm:$0xff]
    %v1107 = vld [vmem:[#allocation8 + $0x1c8] sm:$0xff]
    %v1108 = vld [vmem:[#allocation8 + $0x1d0] sm:$0xff]
    %v1109 = vld [vmem:[#allocation8 + $0x1d8] sm:$0xff]
    %v1110 = vld [vmem:[#allocation8 + $0x1e0] sm:$0xff]
    %v1111 = vld [vmem:[#allocation8 + $0x1e8] sm:$0xff]
    %v1112 = vld [vmem:[#allocation8 + $0x1f0] sm:$0xff]
    %v1113 = vld [vmem:[#allocation8 + $0x1f8] sm:$0xff]
    %v1114 = vld [vmem:[%s4] sm:$0x3]
    %v1116 = vlaneseq
    %v1117 = vshrl.u32 %v1116, 7
    %v1118 = vsub.s32 0, %v1117
    %v1119 = vrot.slane %v1114, %v1118
    %v1120 = vlaneseq
    %v1121 = vshrl.u32 %v1120, 7
    %v1122 = vsub.s32 1, %v1121
    %v1123 = vrot.slane %v1114, %v1122
    %v1190 = vunpack.c.l.b16 %v1050
    %v1191 = vunpack.c.h.b16 %v1050
    %v1192 = vunpack.c.l.b16 %v1051
    %v1193 = vunpack.c.h.b16 %v1051
    %v1194 = vunpack.c.l.b16 %v1052
    %v1195 = vunpack.c.h.b16 %v1052
    %v1196 = vunpack.c.l.b16 %v1053
    %v1197 = vunpack.c.h.b16 %v1053
    %v1198 = vunpack.c.l.b16 %v1054
    %v1199 = vunpack.c.h.b16 %v1054
    %v1200 = vunpack.c.l.b16 %v1055
    %v1201 = vunpack.c.h.b16 %v1055
    %v1202 = vunpack.c.l.b16 %v1056
    %v1203 = vunpack.c.h.b16 %v1056
    %v1204 = vunpack.c.l.b16 %v1057
    %v1205 = vunpack.c.h.b16 %v1057
    %v1206 = vunpack.c.l.b16 %v1058
    %v1207 = vunpack.c.h.b16 %v1058
    %v1208 = vunpack.c.l.b16 %v1059
    %v1209 = vunpack.c.h.b16 %v1059
    %v1210 = vunpack.c.l.b16 %v1060
    %v1211 = vunpack.c.h.b16 %v1060
    %v1212 = vunpack.c.l.b16 %v1061
    %v1213 = vunpack.c.h.b16 %v1061
    %v1214 = vunpack.c.l.b16 %v1062
    %v1215 = vunpack.c.h.b16 %v1062
    %v1216 = vunpack.c.l.b16 %v1063
    %v1217 = vunpack.c.h.b16 %v1063
    %v1218 = vunpack.c.l.b16 %v1064
    %v1219 = vunpack.c.h.b16 %v1064
    %v1220 = vunpack.c.l.b16 %v1065
    %v1221 = vunpack.c.h.b16 %v1065
    %v1222 = vunpack.c.l.b16 %v1066
    %v1223 = vunpack.c.h.b16 %v1066
    %v1224 = vunpack.c.l.b16 %v1067
    %v1225 = vunpack.c.h.b16 %v1067
    %v1226 = vunpack.c.l.b16 %v1068
    %v1227 = vunpack.c.h.b16 %v1068
    %v1228 = vunpack.c.l.b16 %v1069
    %v1229 = vunpack.c.h.b16 %v1069
    %v1230 = vunpack.c.l.b16 %v1070
    %v1231 = vunpack.c.h.b16 %v1070
    %v1232 = vunpack.c.l.b16 %v1071
    %v1233 = vunpack.c.h.b16 %v1071
    %v1234 = vunpack.c.l.b16 %v1072
    %v1235 = vunpack.c.h.b16 %v1072
    %v1236 = vunpack.c.l.b16 %v1073
    %v1237 = vunpack.c.h.b16 %v1073
    %v1238 = vunpack.c.l.b16 %v1074
    %v1239 = vunpack.c.h.b16 %v1074
    %v1240 = vunpack.c.l.b16 %v1075
    %v1241 = vunpack.c.h.b16 %v1075
    %v1242 = vunpack.c.l.b16 %v1076
    %v1243 = vunpack.c.h.b16 %v1076
    %v1244 = vunpack.c.l.b16 %v1077
    %v1245 = vunpack.c.h.b16 %v1077
    %v1246 = vunpack.c.l.b16 %v1078
    %v1247 = vunpack.c.h.b16 %v1078
    %v1248 = vunpack.c.l.b16 %v1079
    %v1249 = vunpack.c.h.b16 %v1079
    %v1250 = vunpack.c.l.b16 %v1080
    %v1251 = vunpack.c.h.b16 %v1080
    %v1252 = vunpack.c.l.b16 %v1081
    %v1253 = vunpack.c.h.b16 %v1081
    %v1254 = vunpack.c.l.b16 %v1082
    %v1255 = vunpack.c.h.b16 %v1082
    %v1256 = vunpack.c.l.b16 %v1083
    %v1257 = vunpack.c.h.b16 %v1083
    %v1258 = vunpack.c.l.b16 %v1084
    %v1259 = vunpack.c.h.b16 %v1084
    %v1260 = vunpack.c.l.b16 %v1085
    %v1261 = vunpack.c.h.b16 %v1085
    %v1262 = vunpack.c.l.b16 %v1086
    %v1263 = vunpack.c.h.b16 %v1086
    %v1264 = vunpack.c.l.b16 %v1087
    %v1265 = vunpack.c.h.b16 %v1087
    %v1266 = vunpack.c.l.b16 %v1088
    %v1267 = vunpack.c.h.b16 %v1088
    %v1268 = vunpack.c.l.b16 %v1089
    %v1269 = vunpack.c.h.b16 %v1089
    %v1270 = vunpack.c.l.b16 %v1090
    %v1271 = vunpack.c.h.b16 %v1090
    %v1272 = vunpack.c.l.b16 %v1091
    %v1273 = vunpack.c.h.b16 %v1091
    %v1274 = vunpack.c.l.b16 %v1092
    %v1275 = vunpack.c.h.b16 %v1092
    %v1276 = vunpack.c.l.b16 %v1093
    %v1277 = vunpack.c.h.b16 %v1093
    %v1278 = vunpack.c.l.b16 %v1094
    %v1279 = vunpack.c.h.b16 %v1094
    %v1280 = vunpack.c.l.b16 %v1095
    %v1281 = vunpack.c.h.b16 %v1095
    %v1282 = vunpack.c.l.b16 %v1096
    %v1283 = vunpack.c.h.b16 %v1096
    %v1284 = vunpack.c.l.b16 %v1097
    %v1285 = vunpack.c.h.b16 %v1097
    %v1286 = vunpack.c.l.b16 %v1098
    %v1287 = vunpack.c.h.b16 %v1098
    %v1288 = vunpack.c.l.b16 %v1099
    %v1289 = vunpack.c.h.b16 %v1099
    %v1290 = vunpack.c.l.b16 %v1100
    %v1291 = vunpack.c.h.b16 %v1100
    %v1292 = vunpack.c.l.b16 %v1101
    %v1293 = vunpack.c.h.b16 %v1101
    %v1294 = vunpack.c.l.b16 %v1102
    %v1295 = vunpack.c.h.b16 %v1102
    %v1296 = vunpack.c.l.b16 %v1103
    %v1297 = vunpack.c.h.b16 %v1103
    %v1298 = vunpack.c.l.b16 %v1104
    %v1299 = vunpack.c.h.b16 %v1104
    %v1300 = vunpack.c.l.b16 %v1105
    %v1301 = vunpack.c.h.b16 %v1105
    %v1302 = vunpack.c.l.b16 %v1106
    %v1303 = vunpack.c.h.b16 %v1106
    %v1304 = vunpack.c.l.b16 %v1107
    %v1305 = vunpack.c.h.b16 %v1107
    %v1306 = vunpack.c.l.b16 %v1108
    %v1307 = vunpack.c.h.b16 %v1108
    %v1308 = vunpack.c.l.b16 %v1109
    %v1309 = vunpack.c.h.b16 %v1109
    %v1310 = vunpack.c.l.b16 %v1110
    %v1311 = vunpack.c.h.b16 %v1110
    %v1312 = vunpack.c.l.b16 %v1111
    %v1313 = vunpack.c.h.b16 %v1111
    %v1314 = vunpack.c.l.b16 %v1112
    %v1315 = vunpack.c.h.b16 %v1112
    %v1316 = vunpack.c.l.b16 %v1113
    %v1317 = vunpack.c.h.b16 %v1113
    %v1318 = vpack.c.b16 %v1192, %v1190
    %v1319 = vpack.c.b16 %v1193, %v1191
    %v1320 = vpack.c.b16 %v1196, %v1194
    %v1321 = vpack.c.b16 %v1197, %v1195
    %v1322 = vpack.c.b16 %v1200, %v1198
    %v1323 = vpack.c.b16 %v1201, %v1199
    %v1324 = vpack.c.b16 %v1204, %v1202
    %v1325 = vpack.c.b16 %v1205, %v1203
    %v1326 = vpack.c.b16 %v1208, %v1206
    %v1327 = vpack.c.b16 %v1209, %v1207
    %v1328 = vpack.c.b16 %v1212, %v1210
    %v1329 = vpack.c.b16 %v1213, %v1211
    %v1330 = vpack.c.b16 %v1216, %v1214
    %v1331 = vpack.c.b16 %v1217, %v1215
    %v1332 = vpack.c.b16 %v1220, %v1218
    %v1333 = vpack.c.b16 %v1221, %v1219
    %v1334 = vpack.c.b16 %v1224, %v1222
    %v1335 = vpack.c.b16 %v1225, %v1223
    %v1336 = vpack.c.b16 %v1228, %v1226
    %v1337 = vpack.c.b16 %v1229, %v1227
    %v1338 = vpack.c.b16 %v1232, %v1230
    %v1339 = vpack.c.b16 %v1233, %v1231
    %v1340 = vpack.c.b16 %v1236, %v1234
    %v1341 = vpack.c.b16 %v1237, %v1235
    %v1342 = vpack.c.b16 %v1240, %v1238
    %v1343 = vpack.c.b16 %v1241, %v1239
    %v1344 = vpack.c.b16 %v1244, %v1242
    %v1345 = vpack.c.b16 %v1245, %v1243
    %v1346 = vpack.c.b16 %v1248, %v1246
    %v1347 = vpack.c.b16 %v1249, %v1247
    %v1348 = vpack.c.b16 %v1252, %v1250
    %v1349 = vpack.c.b16 %v1253, %v1251
    %v1350 = vpack.c.b16 %v1256, %v1254
    %v1351 = vpack.c.b16 %v1257, %v1255
    %v1352 = vpack.c.b16 %v1260, %v1258
    %v1353 = vpack.c.b16 %v1261, %v1259
    %v1354 = vpack.c.b16 %v1264, %v1262
    %v1355 = vpack.c.b16 %v1265, %v1263
    %v1356 = vpack.c.b16 %v1268, %v1266
    %v1357 = vpack.c.b16 %v1269, %v1267
    %v1358 = vpack.c.b16 %v1272, %v1270
    %v1359 = vpack.c.b16 %v1273, %v1271
    %v1360 = vpack.c.b16 %v1276, %v1274
    %v1361 = vpack.c.b16 %v1277, %v1275
    %v1362 = vpack.c.b16 %v1280, %v1278
    %v1363 = vpack.c.b16 %v1281, %v1279
    %v1364 = vpack.c.b16 %v1284, %v1282
    %v1365 = vpack.c.b16 %v1285, %v1283
    %v1366 = vpack.c.b16 %v1288, %v1286
    %v1367 = vpack.c.b16 %v1289, %v1287
    %v1368 = vpack.c.b16 %v1292, %v1290
    %v1369 = vpack.c.b16 %v1293, %v1291
    %v1370 = vpack.c.b16 %v1296, %v1294
    %v1371 = vpack.c.b16 %v1297, %v1295
    %v1372 = vpack.c.b16 %v1300, %v1298
    %v1373 = vpack.c.b16 %v1301, %v1299
    %v1374 = vpack.c.b16 %v1304, %v1302
    %v1375 = vpack.c.b16 %v1305, %v1303
    %v1376 = vpack.c.b16 %v1308, %v1306
    %v1377 = vpack.c.b16 %v1309, %v1307
    %v1378 = vpack.c.b16 %v1312, %v1310
    %v1379 = vpack.c.b16 %v1313, %v1311
    %v1380 = vpack.c.b16 %v1316, %v1314
    %v1381 = vpack.c.b16 %v1317, %v1315
    %1446 = vmatprep.subr.bf16.mxu0 %v1319
    %1447 = vmatpush1.bf16.msra.mxu0 %v1318
    %1448 = vmatprep.subr.bf16.mxu0 %v1321
    %1449 = vmatpush1.bf16.msra.mxu0 %v1320
    %1450 = vmatprep.subr.bf16.mxu0 %v1323
    %1451 = vmatpush1.bf16.msra.mxu0 %v1322
    %1452 = vmatprep.subr.bf16.mxu0 %v1325
    %1453 = vmatpush1.bf16.msra.mxu0 %v1324
    %1454 = vmatprep.subr.bf16.mxu0 %v1327
    %1455 = vmatpush1.bf16.msra.mxu0 %v1326
    %1456 = vmatprep.subr.bf16.mxu0 %v1329
    %1457 = vmatpush1.bf16.msra.mxu0 %v1328
    %1458 = vmatprep.subr.bf16.mxu0 %v1331
    %1459 = vmatpush1.bf16.msra.mxu0 %v1330
    %1460 = vmatprep.subr.bf16.mxu0 %v1333
    %1461 = vmatpush1.bf16.msra.mxu0 %v1332
    %1462 = vmatprep.subr.bf16.mxu0 %v1335
    %1463 = vmatpush1.bf16.msra.mxu0 %v1334
    %1464 = vmatprep.subr.bf16.mxu0 %v1337
    %1465 = vmatpush1.bf16.msra.mxu0 %v1336
    %1466 = vmatprep.subr.bf16.mxu0 %v1339
    %1467 = vmatpush1.bf16.msra.mxu0 %v1338
    %1468 = vmatprep.subr.bf16.mxu0 %v1341
    %1469 = vmatpush1.bf16.msra.mxu0 %v1340
    %1470 = vmatprep.subr.bf16.mxu0 %v1343
    %1471 = vmatpush1.bf16.msra.mxu0 %v1342
    %1472 = vmatprep.subr.bf16.mxu0 %v1345
    %1473 = vmatpush1.bf16.msra.mxu0 %v1344
    %1474 = vmatprep.subr.bf16.mxu0 %v1347
    %1475 = vmatpush1.bf16.msra.mxu0 %v1346
    %1476 = vmatprep.subr.bf16.mxu0 %v1349
    %1477 = vmatpush1.bf16.msra.mxu0 %v1348
    %1478 = vmatprep.mubr.bf16.mxu0 %v1047
    %1479 = vmatmul.mubr.bf16.gmra.mrb[0].mxu0 %v1046
    %v1480 = vpop.f32.mrb[0].mxu0
    %v1481 = vadd.f32 %v1119, %v1480
    %v1482 = vpop.f32.mrb[0].mxu0
    %v1483 = vadd.f32 %v1123, %v1482
    %v1484 = vpop.f32.mrb[0].mxu0
    %v1485 = vpop.f32.mrb[0].mxu0
    %1486 = vdwg.mxu0
    %1487 = vmatprep.subr.bf16.mxu0 %v1351
    %1488 = vmatpush1.bf16.msra.mxu0 %v1350
    %1489 = vmatprep.subr.bf16.mxu0 %v1353
    %1490 = vmatpush1.bf16.msra.mxu0 %v1352
    %1491 = vmatprep.subr.bf16.mxu0 %v1355
    %1492 = vmatpush1.bf16.msra.mxu0 %v1354
    %1493 = vmatprep.subr.bf16.mxu0 %v1357
    %1494 = vmatpush1.bf16.msra.mxu0 %v1356
    %1495 = vmatprep.subr.bf16.mxu0 %v1359
    %1496 = vmatpush1.bf16.msra.mxu0 %v1358
    %1497 = vmatprep.subr.bf16.mxu0 %v1361
    %1498 = vmatpush1.bf16.msra.mxu0 %v1360
    %1499 = vmatprep.subr.bf16.mxu0 %v1363
    %1500 = vmatpush1.bf16.msra.mxu0 %v1362
    %1501 = vmatprep.subr.bf16.mxu0 %v1365
    %1502 = vmatpush1.bf16.msra.mxu0 %v1364
    %1503 = vmatprep.subr.bf16.mxu0 %v1367
    %1504 = vmatpush1.bf16.msra.mxu0 %v1366
    %1505 = vmatprep.subr.bf16.mxu0 %v1369
    %1506 = vmatpush1.bf16.msra.mxu0 %v1368
    %1507 = vmatprep.subr.bf16.mxu0 %v1371
    %1508 = vmatpush1.bf16.msra.mxu0 %v1370
    %1509 = vmatprep.subr.bf16.mxu0 %v1373
    %1510 = vmatpush1.bf16.msra.mxu0 %v1372
    %1511 = vmatprep.subr.bf16.mxu0 %v1375
    %1512 = vmatpush1.bf16.msra.mxu0 %v1374
    %1513 = vmatprep.subr.bf16.mxu0 %v1377
    %1514 = vmatpush1.bf16.msra.mxu0 %v1376
    %1515 = vmatprep.subr.bf16.mxu0 %v1379
    %1516 = vmatpush1.bf16.msra.mxu0 %v1378
    %1517 = vmatprep.subr.bf16.mxu0 %v1381
    %1518 = vmatpush1.bf16.msra.mxu0 %v1380
    %1519 = vmatprep.mubr.bf16.mxu0 %v1049
    %1520 = vmatmul.mubr.bf16.gmra.mrb[0].mxu0 %v1048
    %v1521 = vpop.f32.mrb[0].mxu0
    %v1522 = vadd.f32 %v1481, %v1521
    %v1523 = vpop.f32.mrb[0].mxu0
    %v1524 = vadd.f32 %v1483, %v1523
    %v1525 = vpop.f32.mrb[0].mxu0
    %v1526 = vpop.f32.mrb[0].mxu0
    %1527 = vdwg.mxu0
    %v1528 = vmul.f32 %v1522, 0.2
    %v1529 = vmul.f32 %v1524, 0.2
    %v1530 = vmax.f32 %v1522, %v1528
    %v1531 = vmax.f32 %v1524, %v1529
    %v1532 = vld [vmem:[%s5] sm:$0x3]
    %v1534 = vlaneseq
    %v1535 = vshrl.u32 %v1534, 7
    %v1536 = vsub.s32 0, %v1535
    %v1537 = vrot.slane %v1532, %v1536
    %v1538 = vlaneseq
    %v1539 = vshrl.u32 %v1538, 7
    %v1540 = vsub.s32 1, %v1539
    %v1541 = vrot.slane %v1532, %v1540
    %v1544 = vmul.f32 %v1530, %v1537
    %v1545 = vmul.f32 %v1531, %v1541
    %v1546 = vadd.f32 %v1544, %v1545
    %1547 = vadd.xlane.f32.xlu0 %v1546
    %v1548 = vpop.xlane.xlu0 %1547
    %v1549 = vld [vmem:[#allocation2] sm:$0x1]
    %1551 = vset.pattern.permute.xlu0 0
    %1552 = vperm.xlu0 %1551, %v1549
    %v1553 = vpop.permute.xlu0 %1552
    %v1555 = vlaneseq
    %v1556 = vshrl.u32 %v1555, 7
    %v1557 = vsub.s32 0, %v1556
    %v1558 = vrot.slane %v1553, %v1557
    %v1559 = vadd.f32 %v1548, %v1558
    %v1560 = vsub.f32 0.0, %v1559
    %v1561 = vmul.f32 %v1560, 1.442695
    %v1562 = vpow.pop %v1561
    %v1563 = vadd.f32 %v1562, 1.0
    %v1564 = vrcp.pop %v1563
    %v1565 = vmul.f32 1.0, %v1564
    %v1567 = vlaneseq
    %v1568 = vand.u32 %v1567, 127
    %v1569 = vlaneseq
    %v1570 = vshrl.u32 %v1569, 7
    %v1571 = vsub.s32 %v1568, %v1570
    %v1572 = vrot.slane %v1565, %v1571
    %vm1574 = vcmask 57344
    %1575 = vst.msk [vmem:[#allocation9] sm:$0x1] %vm1574, %v1572
    // Predicated region
    $region42: #{tpu_custom_call.1} parent=1 // pred_check
      _
    $region43: #{tpu_custom_call.1} parent=1 // pred_check_branch
      %1577 = sbr.rel (0) target = $region45
    $region44: #{tpu_custom_call.1} parent=1 // pred_region
      %s1579 = ssub.s32 16, 16
      %1580 = vsyncadd [#allocation5], %s1579
      %s1582 = sshll.u32 [#allocation9], 4
      %s1583 = int_to_ptr.vmem [resolvable:$true] %s1582
      %1585 = dma.vmem_to_hbm [thread:$0]  %s1583, 16, %s7, [#allocation5]
    $region45: #{tpu_custom_call.1} parent=1 // pred_fallthru
      _
    // Predicated region
    $region46: #{tpu_custom_call.1} parent=1 // pred_check
      _
    $region47: #{tpu_custom_call.1} parent=1 // pred_check_branch
      %1587 = sbr.rel (0) target = $region49
    $region48: #{tpu_custom_call.1} parent=1 // pred_region
      %1588 = dma.done [#allocation5], 16
    $region49: #{tpu_custom_call.1} parent=1 // pred_fallthru
      _
    %1589 = vsyncpa [#allocation4], 1
    %1590 = vsyncpa [#allocation7], 1
    %1591 = vsyncpa [#allocation5], 1

</llo_original>
